<compile_context>
chip_gen: v5e
topology: v5e:2x2
jax: 0.10.0
libtpu: 0.0.40
codegen_flags: <defaults>
</compile_context>

<pallas_src>
import functools

import jax
import jax.numpy as jnp
import numpy as np
from jax import lax
from jax.experimental import pallas as pl
from jax.experimental.pallas import tpu as pltpu

N_EMBED = 128
LANE = 128


def _heads_kernel(x_ref, w_ref, o_ref, *, bb, t, sp, nh, hd):
    """One grid step: `bb` batch elements, full sequence length `t`, `nh` fused heads.

    x_ref: (bb*t, C)      rows of the flattened (B*T, C) input (bf16)
    w_ref: (C, 3*sp)      fused [Wq*scale | Wk | Wv] (bf16); each slab holds nh heads of
                          hd lanes (head-major), zero-padded up to sp (multiple of 128)
    o_ref: (bb, t, nh*hd) compact output slab (lane-dense when nh*hd is a 128 multiple)
    """
    x = x_ref[...]                                              # (bb*t, C) bf16

    # Single fused, lane-dense projection on the MXU (bf16 operands, f32 accumulate).
    qkv = jnp.dot(x, w_ref[...],
                  preferred_element_type=jnp.float32)           # (bb*t, 3*sp) f32
    qkv = qkv.astype(jnp.bfloat16)                              # MXU operands for the next matmuls

    # Lane-tile-aligned static slab slices (sp is a multiple of 128); reshapes are pure
    # (8,128) retiles because bb*t is a multiple of 8 (enforced by the wrapper).
    q = qkv[:, 0 * sp:1 * sp].reshape(bb, t, sp)                # 1/sqrt(C) already folded in
    k = qkv[:, 1 * sp:2 * sp].reshape(bb, t, sp)
    v = qkv[:, 2 * sp:3 * sp].reshape(bb, t, sp)

    # Causal mask: one 2-D iota pair, broadcast ONCE and reused by every head.
    row = lax.broadcasted_iota(jnp.int32, (t, t), 0)
    col = lax.broadcasted_iota(jnp.int32, (t, t), 1)
    causal = jnp.broadcast_to((col <= row)[None, :, :], (bb, t, t))

    outs = []
    for h in range(nh):                                          # statically unrolled over heads
        lo, hi = h * hd, (h + 1) * hd
        q_h = q[:, :, lo:hi]                                     # (bb, t, hd) bf16
        k_h = k[:, :, lo:hi]
        v_h = v[:, :, lo:hi]

        # Scores: contraction over the trailing head dim of BOTH operands -> no explicit
        # k.T / per-batch XLU transpose.  f32 accumulation on the MXU.
        s = jnp.einsum("bqd,bkd->bqk", q_h, k_h,
                       preferred_element_type=jnp.float32)       # (bb, t, t) f32
        s = jnp.where(causal, s, -jnp.inf)

        # Numerically-stable softmax (f32); normalization deferred past the PV matmul.
        m = jnp.max(s, axis=-1, keepdims=True)
        p = jnp.exp(s - m)                                       # unnormalized probs in [0, 1]
        denom = jnp.sum(p, axis=-1, keepdims=True)

        # Dropout: identity in eval mode.
        # TODO(synk): training-mode dropout (p=0.2) needs pltpu.prng_seed/prng_random_bits.

        pv = jnp.einsum("bqk,bkd->bqd", p.astype(jnp.bfloat16), v_h,
                        preferred_element_type=jnp.float32)      # (bb, t, hd) f32
        # vrcp runs on the otherwise-idle EUP slot; scales (bb,t,hd) once per row.
        outs.append(pv * pl.reciprocal(denom, approx=True))

    out = outs[0] if nh == 1 else jnp.concatenate(outs, axis=-1)  # (bb, t, nh*hd)
    o_ref[...] = out.astype(o_ref.dtype)


def _choose_batch_block(batch, seq_len, target_rows=512, min_grid=2):
    """Pick Bb (batch elements per grid step) such that:
       * Bb divides batch and Bb*T <= ~512 rows (fills the v6e/v7x 256-wide MXU M dim
         and amortizes the ~0.35us per-step overhead),
       * Bb*T is a multiple of 8 (clean sublane tiling; slab reshapes stay free),
       * the grid keeps >= min_grid steps when possible (v7x dual-TensorCore sharding).
    """
    candidates = [bb for bb in range(1, batch + 1)
                  if batch % bb == 0
                  and (bb * seq_len) % 8 == 0
                  and bb * seq_len <= max(target_rows, seq_len)]
    if not candidates:
        return batch                      # one full block: always a legal BlockSpec
    multi = [bb for bb in candidates if batch // bb >= min_grid]
    return max(multi) if multi else max(candidates)


def _vmem_limit_bytes(bb, t, c, sp, out_lanes):
    """Explicit scoped-VMEM limit when the per-step working set would exceed v5e's
    16 MiB default (v6e/v7x default 32 MiB); capped at 64 MiB (v7x physical)."""
    rows = bb * t
    operand_blocks = 2 * 2 * (rows * c + c * 3 * sp)        # double-buffered bf16 input blocks
    out_block = 2 * bb * t * out_lanes * 4                  # double-buffered output block
    live = rows * 3 * sp * (4 + 2)                          # qkv f32 accumulate + bf16 copy
    live += 3 * bb * t * sp * 2                             # q / k / v slabs
    live += 4 * bb * t * t * 4                              # s, p, mask, max/sum temporaries
    est = int(1.5 * (operand_blocks + out_block + live))
    if est <= 16 * 1024 * 1024:
        return None                                         # defaults are fine on every gen
    return min(est, 64 * 1024 * 1024)


def heads_forward(x, wk, wq, wv):
    """NH fused causal heads.  x: (B, T, C); wk/wq/wv: (NH, H, C) PyTorch Linear weights.
    Returns (B, T, NH*H) with head h occupying lanes [h*H, (h+1)*H)."""
    B, T, C = x.shape
    NH, H, Cw = wk.shape
    assert Cw == C
    F = NH * H                                 # real fused lane width
    Sp = LANE * ((F + LANE - 1) // LANE)       # slab width padded to a lane multiple
    scale = float(C) ** -0.5                   # NOTE: scale uses C (=n_embed), per the source.

    # Weight prep (layout only; free at init time in a real model): heads concatenated
    # head-major along lanes, pre-transposed to (C, F), softmax scale folded into the Q
    # slab, slabs zero-padded to Sp lanes, fused into one (C, 3*Sp) bf16 matrix.
    def slab(w):
        wt = w.reshape(F, C).T                 # (C, F)
        return jnp.pad(wt, ((0, 0), (0, Sp - F)))

    wqkv = jnp.concatenate([slab(wq) * scale, slab(wk), slab(wv)],
                           axis=1).astype(jnp.bfloat16)          # (C, 3*Sp)
    x2d = x.reshape(B * T, C).astype(jnp.bfloat16)               # bf16 MXU operands

    Bb = _choose_batch_block(B, T)
    grid = (B // Bb,)

    kernel = functools.partial(_heads_kernel, bb=Bb, t=T, sp=Sp, nh=NH, hd=H)

    # TODO(synk): for T beyond ~1-2K (block_size here is only 256), replace the full
    # (T, T) score tile with a flash-attention style (q-tile x kv-tile) grid + online
    # softmax — mandatory within v7x's 64 MiB physical VMEM.
    # TODO(synk): if T is not a multiple of 8, pad T in the wrapper (padded key columns
    # fall outside the causal mask) so the slab reshapes stay pure tile retiles.
    out = pl.pallas_call(
        kernel,
        out_shape=jax.ShapeDtypeStruct((B, T, F), x.dtype),
        grid_spec=pltpu.PrefetchScalarGridSpec(
            num_scalar_prefetch=0,
            grid=grid,
            in_specs=[
                pl.BlockSpec((Bb * T, C), lambda i: (i, 0)),
                pl.BlockSpec((C, 3 * Sp), lambda i: (0, 0)),
            ],
            out_specs=pl.BlockSpec((Bb, T, F), lambda i: (i, 0, 0)),
        ),
        compiler_params=pltpu.CompilerParams(
            dimension_semantics=("parallel",),
            vmem_limit_bytes=_vmem_limit_bytes(Bb, T, C, Sp, F)),
    )(x2d, wqkv)

    return out


def head_forward(x, wk, wq, wv):
    """The literal PyTorch `Head`: x (B, T, C); wk/wq/wv (H, C).  NH=1 case of the fused
    kernel (slabs are lane-padded to 128; fuse >=8 such heads to make every lane real)."""
    return heads_forward(x, wk[None], wq[None], wv[None])


def head_reference(x, wk, wq, wv):
    """Pure-JAX f32 reference matching the PyTorch forward (eval mode)."""
    B, T, C = x.shape
    k = x @ wk.T
    q = x @ wq.T
    v = x @ wv.T
    wei = (q @ jnp.swapaxes(k, -2, -1)) * (float(C) ** -0.5)
    mask = jnp.tril(jnp.ones((T, T), dtype=bool))
    wei = jnp.where(mask, wei, -jnp.inf)
    wei = jax.nn.softmax(wei, axis=-1)
    return wei @ v


if __name__ == "__main__":
    key = jax.random.PRNGKey(0)
    kx, kk, kq, kv = jax.random.split(key, 4)

    B, T, C = 2, 8, N_EMBED
    head_size = 16

    x = jax.random.normal(kx, (B, T, C), dtype=jnp.float32)

    # PyTorch nn.Linear default init: U(-1/sqrt(fan_in), 1/sqrt(fan_in))
    bound = 1.0 / np.sqrt(C)
    wk = jax.random.uniform(kk, (head_size, C), jnp.float32, -bound, bound)
    wq = jax.random.uniform(kq, (head_size, C), jnp.float32, -bound, bound)
    wv = jax.random.uniform(kv, (head_size, C), jnp.float32, -bound, bound)

    # --- The PyTorch module: a single Head(head_size=16) -------------------------------
    out = jax.block_until_ready(head_forward(x, wk, wq, wv))
    ref = head_reference(x, wk, wq, wv)
    # bf16 MXU operands + approx reciprocal => relaxed tolerance vs the f32 reference.
    np.testing.assert_allclose(np.asarray(out), np.asarray(ref), rtol=2e-2, atol=2e-2)

    # --- Production path: 8 independent Heads fused into one 128-lane kernel -----------
    NH = 8
    kk8, kq8, kv8 = jax.random.split(jax.random.PRNGKey(1), 3)
    wk8 = jax.random.uniform(kk8, (NH, head_size, C), jnp.float32, -bound, bound)
    wq8 = jax.random.uniform(kq8, (NH, head_size, C), jnp.float32, -bound, bound)
    wv8 = jax.random.uniform(kv8, (NH, head_size, C), jnp.float32, -bound, bound)
    out8 = jax.block_until_ready(heads_forward(x, wk8, wq8, wv8))     # (B, T, 128)
    for h in range(NH):
        ref_h = head_reference(x, wk8[h], wq8[h], wv8[h])
        np.testing.assert_allclose(
            np.asarray(out8[..., h * head_size:(h + 1) * head_size]),
            np.asarray(ref_h), rtol=2e-2, atol=2e-2)

    print("KERNEL_OK")
</pallas_src>

<mosaic_0001>
module attributes {stable_mosaic.version = 11 : i64} {
  func.func @_heads_kernel(%arg0: i32, %arg1: memref<8x128xbf16, #tpu.memory_space<vmem>>, %arg2: memref<128x384xbf16, #tpu.memory_space<vmem>>, %arg3: memref<1x8x16xf32, #tpu.memory_space<vmem>>) attributes {dimension_semantics = [#tpu.dimension_semantics<parallel>], iteration_bounds = array<i64: 2>, scalar_prefetch = 0 : i64, scratch_operands = 0 : i64, tpu.core_type = #tpu.core_type<tc>, window_params = [{transform_indices = @transform_0, window_bounds = array<i64: 8, 128>}, {pipeline_mode = #tpu.pipeline_mode<synchronous>, transform_indices = @transform_1, window_bounds = array<i64: 128, 384>}, {transform_indices = @transform_2, window_bounds = array<i64: 1, 8, 16>}]} {
    %c0 = arith.constant 0 : index
    %c0_0 = arith.constant 0 : index
    %0 = vector.load %arg1[%c0, %c0_0] : memref<8x128xbf16, #tpu.memory_space<vmem>>, vector<8x128xbf16>
    %c0_1 = arith.constant 0 : index
    %c0_2 = arith.constant 0 : index
    %1 = vector.load %arg2[%c0_1, %c0_2] : memref<128x384xbf16, #tpu.memory_space<vmem>>, vector<128x384xbf16>
    %cst = arith.constant dense<0.000000e+00> : vector<8x384xf32>
    %2 = tpu.matmul %0, %1, %cst {dimension_numbers = #tpu.dot_dimension_numbers<[1], [0], [0], [1], [0, 0, 1, 1], [], []>} : vector<8x128xbf16>, vector<128x384xbf16>, vector<8x384xf32> -> vector<8x384xf32>
    %3 = arith.truncf %2 : vector<8x384xf32> to vector<8x384xbf16>
    %4 = vector.extract_strided_slice %3 {offsets = [0, 0], sizes = [8, 128], strides = [1, 1]} : vector<8x384xbf16> to vector<8x128xbf16>
    %5 = vector.shape_cast %4 : vector<8x128xbf16> to vector<1x8x128xbf16>
    %6 = vector.extract_strided_slice %3 {offsets = [0, 128], sizes = [8, 128], strides = [1, 1]} : vector<8x384xbf16> to vector<8x128xbf16>
    %7 = vector.shape_cast %6 : vector<8x128xbf16> to vector<1x8x128xbf16>
    %8 = vector.extract_strided_slice %3 {offsets = [0, 256], sizes = [8, 128], strides = [1, 1]} : vector<8x384xbf16> to vector<8x128xbf16>
    %9 = vector.shape_cast %8 : vector<8x128xbf16> to vector<1x8x128xbf16>
    %10 = tpu.iota {dimensions = array<i32: 0>} : vector<8x8xi32>
    %11 = tpu.iota {dimensions = array<i32: 1>} : vector<8x8xi32>
    %12 = arith.cmpi sle, %11, %10 : vector<8x8xi32>
    %13 = vector.shape_cast %12 : vector<8x8xi1> to vector<1x8x8xi1>
    %14 = vector.extract_strided_slice %5 {offsets = [0, 0, 0], sizes = [1, 8, 16], strides = [1, 1, 1]} : vector<1x8x128xbf16> to vector<1x8x16xbf16>
    %15 = vector.extract_strided_slice %7 {offsets = [0, 0, 0], sizes = [1, 8, 16], strides = [1, 1, 1]} : vector<1x8x128xbf16> to vector<1x8x16xbf16>
    %16 = vector.extract_strided_slice %9 {offsets = [0, 0, 0], sizes = [1, 8, 16], strides = [1, 1, 1]} : vector<1x8x128xbf16> to vector<1x8x16xbf16>
    "tpu.trace_start"() <{level = 10 : i32, message = "bqd,bkd->bqk"}> : () -> ()
    %cst_3 = arith.constant dense<0.000000e+00> : vector<1x8x8xf32>
    %17 = tpu.matmul %14, %15, %cst_3 {dimension_numbers = #tpu.dot_dimension_numbers<[2], [2], [1], [1], [0, 0, 0, 1, 1, 1], [0], [0]>} : vector<1x8x16xbf16>, vector<1x8x16xbf16>, vector<1x8x8xf32> -> vector<1x8x8xf32>
    %cst_4 = arith.constant 0xFF800000 : f32
    "tpu.trace_stop"() : () -> ()
    %18 = vector.broadcast %cst_4 : f32 to vector<1x8x8xf32>
    %19 = arith.select %13, %17, %18 : vector<1x8x8xi1>, vector<1x8x8xf32>
    %cst_5 = arith.constant dense<0xFF800000> : vector<1x8xf32>
    %20 = vector.multi_reduction <maximumf>, %19, %cst_5 [2] : vector<1x8x8xf32> to vector<1x8xf32>
    %21 = vector.shape_cast %20 : vector<1x8xf32> to vector<1x8x1xf32>
    %22 = vector.broadcast %21 : vector<1x8x1xf32> to vector<1x8x8xf32>
    %23 = arith.subf %19, %22 : vector<1x8x8xf32>
    %24 = math.exp %23 : vector<1x8x8xf32>
    %cst_6 = arith.constant dense<0.000000e+00> : vector<1x8xf32>
    %25 = vector.multi_reduction <add>, %24, %cst_6 [2] : vector<1x8x8xf32> to vector<1x8xf32>
    %26 = vector.shape_cast %25 : vector<1x8xf32> to vector<1x8x1xf32>
    %27 = arith.truncf %24 : vector<1x8x8xf32> to vector<1x8x8xbf16>
    "tpu.trace_start"() <{level = 10 : i32, message = "bqk,bkd->bqd"}> : () -> ()
    %cst_7 = arith.constant dense<0.000000e+00> : vector<1x8x16xf32>
    %28 = tpu.matmul %27, %16, %cst_7 {dimension_numbers = #tpu.dot_dimension_numbers<[2], [1], [1], [2], [0, 0, 0, 1, 1, 2], [0], [0]>} : vector<1x8x8xbf16>, vector<1x8x16xbf16>, vector<1x8x16xf32> -> vector<1x8x16xf32>
    "tpu.trace_stop"() : () -> ()
    %29 = tpu.reciprocal %26 {approx = true} : vector<1x8x1xf32> -> vector<1x8x1xf32>
    %30 = vector.broadcast %29 : vector<1x8x1xf32> to vector<1x8x16xf32>
    %31 = arith.mulf %28, %30 : vector<1x8x16xf32>
    %c0_8 = arith.constant 0 : index
    %c0_9 = arith.constant 0 : index
    %c0_10 = arith.constant 0 : index
    %32 = vector.load %arg3[%c0_8, %c0_9, %c0_10] : memref<1x8x16xf32, #tpu.memory_space<vmem>>, vector<1x8x16xf32>
    tpu.vector_store %arg3[%c0_8, %c0_9, %c0_10], %31 {strides = array<i32>} : memref<1x8x16xf32, #tpu.memory_space<vmem>>, vector<1x8x16xf32>,
    return
  }
  func.func @transform_0(%arg0: i32) -> (i32, i32) {
    %c0_i32 = arith.constant 0 : i32
    %c0_i32_0 = arith.constant 0 : i32
    return %arg0, %c0_i32 : i32, i32
  }
  func.func @transform_1(%arg0: i32) -> (i32, i32) {
    %c0_i32 = arith.constant 0 : i32
    %c0_i32_0 = arith.constant 0 : i32
    %c0_i32_1 = arith.constant 0 : i32
    return %c0_i32, %c0_i32_0 : i32, i32
  }
  func.func @transform_2(%arg0: i32) -> (i32, i32, i32) {
    %c0_i32 = arith.constant 0 : i32
    %c0_i32_0 = arith.constant 0 : i32
    %c0_i32_1 = arith.constant 0 : i32
    return %arg0, %c0_i32, %c0_i32_0 : i32, i32, i32
  }
}

</mosaic_0001>

<llo_original>
// kernel: tpu_custom_call.1
$region0: #{tpu_custom_call.1}
  #allocation0 [shape = 'u32[]', space=smem, size = 0x4, offset = 0x4, fixed_abs, tag = 'smem constant byte address 0x4 - core index']
  #allocation1 [shape = 'u32[72,128]{1,0:T(1,128)}', space=vmem, size = 0x9000, scoped, tag = 'internal scratch']
  %s0 = inlined_call_operand.hbm [shape: bf16[16,128], index: 0, kind: input, shape index: {}]
  %s1 = inlined_call_operand.hbm [shape: bf16[128,384], index: 1, kind: input, shape index: {}]
  %s2 = inlined_call_operand.hbm [shape: f32[2,8,16], index: 2, kind: output, shape index: {}]
  %s3 = sld [smem:[#allocation0]]
  $region49: #{tpu_custom_call.1} parent=0
    _
  %s5 = ssub.s32 1, %s3
  %s6 = scalar_select 0, %s5, %s3
  $region1: #{tpu_custom_call.1} parent=0
    #allocation2 [shape = 'u8[4096]{0}', space=vmem, size = 0x1000, scoped, tag = 'input window, operand 0']
    #allocation3 [shape = 's32[2]{0}', space=sflag, size = 0x8, scoped, tag = 'scoped memory for tpu_custom_call.1']
    #allocation4 [shape = 's32[2]{0}', space=sflag, size = 0x8, scoped, tag = 'scoped memory for tpu_custom_call.1']
    #allocation5 [shape = 'u8[98304]{0}', space=vmem, size = 0x18000, scoped, tag = 'input window, operand 1, single buffered']
    #allocation6 [shape = 's32[1]{0}', space=sflag, size = 0x4, scoped, tag = 'scoped memory for tpu_custom_call.1']
    #allocation7 [shape = 'u8[8192]{0}', space=vmem, size = 0x2000, scoped, tag = 'output window, operand 0']
    %7 = vsyncpa [#allocation3], 0
    %s8 = scalar_lea.sflag [#allocation3], 1
    %9 = vsyncpa %s8, 0
    %10 = vsyncpa [#allocation6], 0
    %11 = vsyncpa [#allocation4], 0
    %s12 = scalar_lea.sflag [#allocation4], 1
    %13 = vsyncpa %s12, 0
    loop: start=0, step=1, limit=4
    $region2: #{tpu_custom_call.1} parent=1 // loop_pre_header
      _
    $region3: #{tpu_custom_call.1} parent=1 // loop_header
      %s15 = sphi 0, %s19
      %p16 = scmp.ge.s32.totalorder %s15, 4
      %s25 = sphi 0, %s27
      %s28 = sphi 0, %s25
      %s29 = sphi 0, %s28
      %s45 = sphi 0, %s29
      %s49 = sphi 0, %s49
      %s51 = sphi 0, %s49
      %s52 = sphi 0, %s51
      %s66 = sphi 0, %s52
      %s72 = sphi 0, %s74
      %s75 = sphi 0, %s72
      %s76 = sphi 0, %s75
      %s92 = sphi 0, %s76
    $region4: #{tpu_custom_call.1} parent=1 // loop_header_branch
      %18 = sbr.rel (%p16) target = $region8
    $region5: #{tpu_custom_call.1} parent=1 // loop_body
      %s20 = ssub.s32 %s15, 1
      %s21 = ssub.s32 %s15, 2
      %s22 = sadd.s32 %s15, 1
      %s23 = ssub.s32 %s15, %s22
      %p24 = scmp.eq.s32.totalorder %s23, 0
      %s26 = sadd.s32 %s25, 1
      %s27 = scalar_select %p24, %s25, %s26
      %p30 = pneg %p24
      %p31 = scmp.eq.s32.totalorder %s15, 1
      %p32 = por %p30, %p31
      %p33 = scmp.ne.s32.totalorder %s25, %s28
      %p34 = scmp.eq.s32.totalorder %s15, 0
      %p35 = por %p33, %p34
      %p36 = scmp.ne.s32.totalorder %s25, %s28
      %p37 = scmp.eq.s32.totalorder %s20, 1
      %p38 = por %p36, %p37
      %p39 = scmp.ne.s32.totalorder %s28, %s29
      %p40 = scmp.eq.s32.totalorder %s20, 0
      %p41 = por %p39, %p40
      %p42 = scmp.ne.s32.totalorder %s28, %s29
      %p43 = scmp.eq.s32.totalorder %s21, 1
      %p44 = por %p42, %p43
      %p46 = scmp.ne.s32.totalorder %s29, %s45
      %p47 = scmp.eq.s32.totalorder %s21, 0
      %p48 = por %p46, %p47
      %s50 = sadd.s32 %s49, 1
      %p53 = scmp.eq.s32.totalorder %s15, 1
      %p54 = scmp.ne.s32.totalorder %s49, %s51
      %p55 = scmp.eq.s32.totalorder %s15, 0
      %p56 = por %p54, %p55
      %p57 = scmp.ne.s32.totalorder %s49, %s51
      %p58 = scmp.eq.s32.totalorder %s20, 1
      %p59 = por %p57, %p58
      %p60 = scmp.ne.s32.totalorder %s51, %s52
      %p61 = scmp.eq.s32.totalorder %s20, 0
      %p62 = por %p60, %p61
      %p63 = scmp.ne.s32.totalorder %s51, %s52
      %p64 = scmp.eq.s32.totalorder %s21, 1
      %p65 = por %p63, %p64
      %p67 = scmp.ne.s32.totalorder %s52, %s66
      %p68 = scmp.eq.s32.totalorder %s21, 0
      %p69 = por %p67, %p68
      %s70 = ssub.s32 %s15, %s22
      %p71 = scmp.eq.s32.totalorder %s70, 0
      %s73 = sadd.s32 %s72, 1
      %s74 = scalar_select %p71, %s72, %s73
      %p77 = pneg %p71
      %p78 = scmp.eq.s32.totalorder %s15, 1
      %p79 = por %p77, %p78
      %p80 = scmp.ne.s32.totalorder %s72, %s75
      %p81 = scmp.eq.s32.totalorder %s15, 0
      %p82 = por %p80, %p81
      %p83 = scmp.ne.s32.totalorder %s72, %s75
      %p84 = scmp.eq.s32.totalorder %s20, 1
      %p85 = por %p83, %p84
      %p86 = scmp.ne.s32.totalorder %s75, %s76
      %p87 = scmp.eq.s32.totalorder %s20, 0
      %p88 = por %p86, %p87
      %p89 = scmp.ne.s32.totalorder %s75, %s76
      %p90 = scmp.eq.s32.totalorder %s21, 1
      %p91 = por %p89, %p90
      %p93 = scmp.ne.s32.totalorder %s76, %s92
      %p94 = scmp.eq.s32.totalorder %s21, 0
      %p95 = por %p93, %p94
      %p96 = scmp.le.s32.totalorder 1, %s15
      %p97 = scmp.lt.s32.totalorder %s15, 3
      %p98 = pnand %p96, %p97
      %p99 = pneg %p98
      // Predicated region
      $region9: #{tpu_custom_call.1} parent=5 // pred_check
        _
      $region10: #{tpu_custom_call.1} parent=5 // pred_check_branch
        %101 = sbr.rel (%p98) target = $region12
      $region11: #{tpu_custom_call.1} parent=5 // pred_region
        %s102 = ssub.s32 %s15, 1
        // Predicated region
        $region13: #{tpu_custom_call.1} parent=11 // pred_check
          %p103 = pneg %p62
        $region14: #{tpu_custom_call.1} parent=11 // pred_check_branch
          %105 = sbr.rel (%p103) target = $region16
        $region15: #{tpu_custom_call.1} parent=11 // pred_region
          %107 = vsyncadd [#allocation6], 0
          %s108 = sshll.u32 %s1, 4
          %s109 = int_to_ptr.hbm [resolvable:$true] %s108
          %s110 = sshll.u32 [#allocation5], 4
          %s111 = int_to_ptr.vmem [resolvable:$true] %s110
          %116 = dma.hbm_to_vmem [thread:$0]  %s109, 3072, %s111, [#allocation6], 192, 192, 12
        $region16: #{tpu_custom_call.1} parent=11 // pred_fallthru
          _
      $region12: #{tpu_custom_call.1} parent=5 // pred_fallthru
        _
      %p117 = scmp.lt.s32.totalorder %s15, 2
      // Predicated region
      $region17: #{tpu_custom_call.1} parent=5 // pred_check
        %p118 = pneg %p117
      $region18: #{tpu_custom_call.1} parent=5 // pred_check_branch
        %120 = sbr.rel (%p118) target = $region20
      $region19: #{tpu_custom_call.1} parent=5 // pred_region
        // Predicated region
        $region21: #{tpu_custom_call.1} parent=19 // pred_check
          %p121 = pneg %p35
        $region22: #{tpu_custom_call.1} parent=19 // pred_check_branch
          %123 = sbr.rel (%p121) target = $region24
        $region23: #{tpu_custom_call.1} parent=19 // pred_region
          %s124 = sand.u32 %s25, 1
          %s125 = scalar_lea.sflag [#allocation3], %s124
          %s126 = sand.u32 %s25, 1
          %s127 = smul.addr %s126, 4
          %s128 = scalar_lea.vmem [#allocation2], %s127
          %130 = vsyncadd %s125, 0
          %s131 = smul.addr %s15, 4
          %s132 = scalar_lea.hbm %s0, %s131
          %s134 = sshll.u32 %s132, 4
          %s135 = int_to_ptr.hbm [resolvable:$true] %s134
          %s136 = sshll.u32 %s128, 4
          %s137 = int_to_ptr.vmem [resolvable:$true] %s136
          %139 = dma.hbm_to_vmem [thread:$0]  %s135, 64, %s137, %s125
        $region24: #{tpu_custom_call.1} parent=19 // pred_fallthru
          _
      $region20: #{tpu_custom_call.1} parent=5 // pred_fallthru
        _
      %p140 = scmp.le.s32.totalorder 1, %s15
      %p141 = scmp.lt.s32.totalorder %s15, 3
      %p142 = pnand %p140, %p141
      %p143 = pneg %p142
      // Predicated region
      $region25: #{tpu_custom_call.1} parent=5 // pred_check
        _
      $region26: #{tpu_custom_call.1} parent=5 // pred_check_branch
        %145 = sbr.rel (%p142) target = $region28
      $region27: #{tpu_custom_call.1} parent=5 // pred_region
        %s146 = ssub.s32 %s15, 1
        %s147 = sand.u32 %s28, 1
        %s148 = scalar_lea.sflag [#allocation3], %s147
        %s149 = sand.u32 %s28, 1
        %s150 = smul.addr %s149, 4
        %s151 = scalar_lea.vmem [#allocation2], %s150
        // Predicated region
        $region29: #{tpu_custom_call.1} parent=27 // pred_check
          %p152 = pneg %p41
        $region30: #{tpu_custom_call.1} parent=27 // pred_check_branch
          %154 = sbr.rel (%p152) target = $region32
        $region31: #{tpu_custom_call.1} parent=27 // pred_region
          %156 = dma.done %s148, 64
        $region32: #{tpu_custom_call.1} parent=27 // pred_fallthru
          _
        // Predicated region
        $region33: #{tpu_custom_call.1} parent=27 // pred_check
          %p157 = pneg %p62
        $region34: #{tpu_custom_call.1} parent=27 // pred_check_branch
          %159 = sbr.rel (%p157) target = $region36
        $region35: #{tpu_custom_call.1} parent=27 // pred_region
          %161 = dma.done [#allocation6], 3072
        $region36: #{tpu_custom_call.1} parent=27 // pred_fallthru
          _
        %s162 = sand.u32 %s28, 1
        %s163 = scalar_lea.sflag [#allocation3], %s162
        %s164 = sand.u32 %s28, 1
        %s165 = smul.addr %s164, 4
        %s166 = scalar_lea.vmem [#allocation2], %s165
        %p167 = pneg %p41
        %p168 = pneg %p38
        %p169 = pneg %p62
        %p170 = pneg %p59
        %p171 = pneg %p88
        %p172 = pneg %p85
        %s173 = sand.u32 %s75, 1
        %s174 = scalar_lea.sflag [#allocation4], %s173
        %s175 = sand.u32 %s75, 1
        %s176 = smul.addr %s175, 8
        %s177 = scalar_lea.vmem [#allocation7], %s176
        %v179 = vld [vmem:[%s151] sm:$0xf]
        %v180 = vld [vmem:[#allocation5] sm:$0xff]
        %v181 = vld [vmem:[#allocation5 + $0x8] sm:$0xf]
        %v182 = vld [vmem:[#allocation5 + $0xc] sm:$0xff]
        %v183 = vld [vmem:[#allocation5 + $0x14] sm:$0xf]
        %v184 = vld [vmem:[#allocation5 + $0x18] sm:$0xff]
        %v185 = vld [vmem:[#allocation5 + $0x20] sm:$0xf]
        %v186 = vld [vmem:[#allocation5 + $0x24] sm:$0xff]
        %v187 = vld [vmem:[#allocation5 + $0x2c] sm:$0xf]
        %v188 = vld [vmem:[#allocation5 + $0x30] sm:$0xff]
        %v189 = vld [vmem:[#allocation5 + $0x38] sm:$0xf]
        %v190 = vld [vmem:[#allocation5 + $0x3c] sm:$0xff]
        %v191 = vld [vmem:[#allocation5 + $0x44] sm:$0xf]
        %v192 = vld [vmem:[#allocation5 + $0x48] sm:$0xff]
        %v193 = vld [vmem:[#allocation5 + $0x50] sm:$0xf]
        %v194 = vld [vmem:[#allocation5 + $0x54] sm:$0xff]
        %v195 = vld [vmem:[#allocation5 + $0x5c] sm:$0xf]
        %v196 = vld [vmem:[#allocation5 + $0x60] sm:$0xff]
        %v197 = vld [vmem:[#allocation5 + $0x68] sm:$0xf]
        %v198 = vld [vmem:[#allocation5 + $0x6c] sm:$0xff]
        %v199 = vld [vmem:[#allocation5 + $0x74] sm:$0xf]
        %v200 = vld [vmem:[#allocation5 + $0x78] sm:$0xff]
        %v201 = vld [vmem:[#allocation5 + $0x80] sm:$0xf]
        %v202 = vld [vmem:[#allocation5 + $0x84] sm:$0xff]
        %v203 = vld [vmem:[#allocation5 + $0x8c] sm:$0xf]
        %v204 = vld [vmem:[#allocation5 + $0x90] sm:$0xff]
        %v205 = vld [vmem:[#allocation5 + $0x98] sm:$0xf]
        %v206 = vld [vmem:[#allocation5 + $0x9c] sm:$0xff]
        %v207 = vld [vmem:[#allocation5 + $0xa4] sm:$0xf]
        %v208 = vld [vmem:[#allocation5 + $0xa8] sm:$0xff]
        %v209 = vld [vmem:[#allocation5 + $0xb0] sm:$0xf]
        %v210 = vld [vmem:[#allocation5 + $0xb4] sm:$0xff]
        %v211 = vld [vmem:[#allocation5 + $0xbc] sm:$0xf]
        %v244 = vunpack.c.l.b16 %v180
        %v245 = vunpack.c.h.b16 %v180
        %v246 = vunpack.c.l.b16 %v181
        %v247 = vunpack.c.l.b16 %v182
        %v248 = vunpack.c.h.b16 %v182
        %v249 = vunpack.c.l.b16 %v183
        %v250 = vunpack.c.l.b16 %v184
        %v251 = vunpack.c.h.b16 %v184
        %v252 = vunpack.c.l.b16 %v185
        %v253 = vunpack.c.l.b16 %v186
        %v254 = vunpack.c.h.b16 %v186
        %v255 = vunpack.c.l.b16 %v187
        %v256 = vunpack.c.l.b16 %v188
        %v257 = vunpack.c.h.b16 %v188
        %v258 = vunpack.c.l.b16 %v189
        %v259 = vunpack.c.l.b16 %v190
        %v260 = vunpack.c.h.b16 %v190
        %v261 = vunpack.c.l.b16 %v191
        %v262 = vunpack.c.l.b16 %v192
        %v263 = vunpack.c.h.b16 %v192
        %v264 = vunpack.c.l.b16 %v193
        %v265 = vunpack.c.l.b16 %v194
        %v266 = vunpack.c.h.b16 %v194
        %v267 = vunpack.c.l.b16 %v195
        %v268 = vunpack.c.l.b16 %v196
        %v269 = vunpack.c.h.b16 %v196
        %v270 = vunpack.c.l.b16 %v197
        %v271 = vunpack.c.l.b16 %v198
        %v272 = vunpack.c.h.b16 %v198
        %v273 = vunpack.c.l.b16 %v199
        %v274 = vunpack.c.l.b16 %v200
        %v275 = vunpack.c.h.b16 %v200
        %v276 = vunpack.c.l.b16 %v201
        %v277 = vunpack.c.l.b16 %v202
        %v278 = vunpack.c.h.b16 %v202
        %v279 = vunpack.c.l.b16 %v203
        %v280 = vunpack.c.l.b16 %v204
        %v281 = vunpack.c.h.b16 %v204
        %v282 = vunpack.c.l.b16 %v205
        %v283 = vunpack.c.l.b16 %v206
        %v284 = vunpack.c.h.b16 %v206
        %v285 = vunpack.c.l.b16 %v207
        %v286 = vunpack.c.l.b16 %v208
        %v287 = vunpack.c.h.b16 %v208
        %v288 = vunpack.c.l.b16 %v209
        %v289 = vunpack.c.l.b16 %v210
        %v290 = vunpack.c.h.b16 %v210
        %v291 = vunpack.c.l.b16 %v211
        %v292 = vpack.c.b16 %v247, %v244
        %v293 = vpack.c.b16 %v248, %v245
        %v294 = vpack.c.b16 %v249, %v246
        %v295 = vpack.c.b16 %v253, %v250
        %v296 = vpack.c.b16 %v254, %v251
        %v297 = vpack.c.b16 %v255, %v252
        %v298 = vpack.c.b16 %v259, %v256
        %v299 = vpack.c.b16 %v260, %v257
        %v300 = vpack.c.b16 %v261, %v258
        %v301 = vpack.c.b16 %v265, %v262
        %v302 = vpack.c.b16 %v266, %v263
        %v303 = vpack.c.b16 %v267, %v264
        %v304 = vpack.c.b16 %v271, %v268
        %v305 = vpack.c.b16 %v272, %v269
        %v306 = vpack.c.b16 %v273, %v270
        %v307 = vpack.c.b16 %v277, %v274
        %v308 = vpack.c.b16 %v278, %v275
        %v309 = vpack.c.b16 %v279, %v276
        %v310 = vpack.c.b16 %v283, %v280
        %v311 = vpack.c.b16 %v284, %v281
        %v312 = vpack.c.b16 %v285, %v282
        %v313 = vpack.c.b16 %v289, %v286
        %v314 = vpack.c.b16 %v290, %v287
        %v315 = vpack.c.b16 %v291, %v288
        %340 = vmatpush.bf16.msra.mxu0 %v313
        %341 = vmatpush.bf16.msra.mxu0 %v310
        %342 = vmatpush.bf16.msra.mxu0 %v307
        %343 = vmatpush.bf16.msra.mxu0 %v304
        %344 = vmatpush.bf16.msra.mxu0 %v301
        %345 = vmatpush.bf16.msra.mxu0 %v298
        %346 = vmatpush.bf16.msra.mxu0 %v295
        %347 = vmatpush.bf16.msra.mxu0 %v292
        %348 = vmatmul.bf16.gmra.mxu0 %v179
        %v349 = vpop.f32.mrf.mxu0
        %v350 = vadd.f32 0.0, %v349
        %v351 = vpop.f32.mrf.mxu0
        %352 = vdwg.mxu0
        %353 = vmatpush.bf16.msra.mxu0 %v314
        %354 = vmatpush.bf16.msra.mxu0 %v311
        %355 = vmatpush.bf16.msra.mxu0 %v308
        %356 = vmatpush.bf16.msra.mxu0 %v305
        %357 = vmatpush.bf16.msra.mxu0 %v302
        %358 = vmatpush.bf16.msra.mxu0 %v299
        %359 = vmatpush.bf16.msra.mxu0 %v296
        %360 = vmatpush.bf16.msra.mxu0 %v293
        %361 = vmatmul.bf16.gmra.mxu0 %v179
        %v362 = vpop.f32.mrf.mxu0
        %v363 = vadd.f32 0.0, %v362
        %v364 = vpop.f32.mrf.mxu0
        %365 = vdwg.mxu0
        %366 = vmatpush.bf16.msra.mxu0 %v315
        %367 = vmatpush.bf16.msra.mxu0 %v312
        %368 = vmatpush.bf16.msra.mxu0 %v309
        %369 = vmatpush.bf16.msra.mxu0 %v306
        %370 = vmatpush.bf16.msra.mxu0 %v303
        %371 = vmatpush.bf16.msra.mxu0 %v300
        %372 = vmatpush.bf16.msra.mxu0 %v297
        %373 = vmatpush.bf16.msra.mxu0 %v294
        %374 = vmatmul.bf16.gmra.mxu0 %v179
        %v375 = vpop.f32.mrf.mxu0
        %v376 = vadd.f32 0.0, %v375
        %v377 = vpop.f32.mrf.mxu0
        %378 = vdwg.mxu0
        %v379 = vpack.c.bf16 %v363, %v350
        %v380 = vpack.c.bf16 %v376, %v376
        %v382 = vrot.slane %v379, 4
        %v383 = vlaneseq
        %v384 = vshrl.u32 %v383, 7
        %v385 = vlaneseq
        %v386 = vand.u32 %v385, 127
        %vm387 = vcmp.le.s32.totalorder %v386, %v384
        %vm388 = vcmask 130048
        %v390 = vsel %vm388, %v379, 0
        %v393 = vsel %vm388, %v382, 0
        %395 = vmatpush.bf16.xpose.msra.mxu0 0
        %396 = vmatpush.bf16.xpose.msra.mxu0 0
        %397 = vmatpush.bf16.xpose.msra.mxu0 0
        %398 = vmatpush.bf16.xpose.msra.mxu0 0
        %399 = vmatpush.bf16.xpose.msra.mxu0 0
        %400 = vmatpush.bf16.xpose.msra.mxu0 0
        %401 = vmatpush.bf16.xpose.msra.mxu0 0
        %402 = vmatpush.bf16.xpose.msra.mxu0 %v393
        %403 = vmatmul.bf16.gmra.mxu0 %v390
        %v404 = vpop.f32.mrf.mxu0
        %v405 = vadd.f32 0.0, %v404
        %v406 = vpop.f32.mrf.mxu0
        %407 = vdwg.mxu0
        %v408 = vsel %vm387, %v405, -inf
        %vm409 = vcmask 64512
        %v410 = vsel %vm409, %v408, -inf
        %411 = vmax.xlane.f32.xlu0 %v410
        %v412 = vpop.xlane.xlu0 %411
        %v413 = vsub.f32 %v408, %v412
        %v414 = vmul.f32 %v413, 1.442695
        %v415 = vpow.pop %v414
        %v416 = vsel %vm409, %v415, 0.0
        %417 = vadd.xlane.f32.xlu0 %v416
        %v418 = vpop.xlane.xlu0 %417
        %v419 = vpack.c.bf16 %v415, %v415
        %v421 = vsel %vm409, %v419, 0
        %vm423 = vcmask 1043456
        %v425 = vsel %vm423, %v380, 0
        %427 = vmatpush.bf16.msra.mxu0 0
        %428 = vmatpush.bf16.msra.mxu0 0
        %429 = vmatpush.bf16.msra.mxu0 0
        %430 = vmatpush.bf16.msra.mxu0 0
        %431 = vmatpush.bf16.msra.mxu0 0
        %432 = vmatpush.bf16.msra.mxu0 0
        %433 = vmatpush.bf16.msra.mxu0 0
        %434 = vmatpush.bf16.msra.mxu0 %v425
        %435 = vmatmul.bf16.gmra.mxu0 %v421
        %v436 = vpop.f32.mrf.mxu0
        %v437 = vadd.f32 0.0, %v436
        %v438 = vpop.f32.mrf.mxu0
        %439 = vdwg.mxu0
        %v440 = vrcp.pop %v418
        %v441 = vmul.f32 %v437, %v440
        %442 = vst.msk [vmem:[%s177] sm:$0xff] %vm388, %v441
        %s443 = sand.u32 %s75, 1
        %s444 = scalar_lea.sflag [#allocation4], %s443
        %s445 = sand.u32 %s75, 1
        %s446 = smul.addr %s445, 8
        %s447 = scalar_lea.vmem [#allocation7], %s446
        // Predicated region
        $region37: #{tpu_custom_call.1} parent=27 // pred_check
          %p448 = pneg %p85
        $region38: #{tpu_custom_call.1} parent=27 // pred_check_branch
          %450 = sbr.rel (%p448) target = $region40
        $region39: #{tpu_custom_call.1} parent=27 // pred_region
          %452 = vsyncadd %s444, 0
          %s453 = smul.addr %s20, 8
          %s454 = scalar_lea.hbm %s2, %s453
          %s456 = sshll.u32 %s447, 4
          %s457 = int_to_ptr.vmem [resolvable:$true] %s456
          %s458 = sshll.u32 %s454, 4
          %s459 = int_to_ptr.hbm [resolvable:$true] %s458
          %461 = dma.vmem_to_hbm [thread:$0]  %s457, 128, %s459, %s444
        $region40: #{tpu_custom_call.1} parent=27 // pred_fallthru
          _
      $region28: #{tpu_custom_call.1} parent=5 // pred_fallthru
        _
      %p462 = scmp.le.s32.totalorder 2, %s15
      // Predicated region
      $region41: #{tpu_custom_call.1} parent=5 // pred_check
        %p463 = pneg %p462
      $region42: #{tpu_custom_call.1} parent=5 // pred_check_branch
        %465 = sbr.rel (%p463) target = $region44
      $region43: #{tpu_custom_call.1} parent=5 // pred_region
        %s466 = ssub.s32 %s15, 2
        // Predicated region
        $region45: #{tpu_custom_call.1} parent=43 // pred_check
          %p467 = pneg %p91
        $region46: #{tpu_custom_call.1} parent=43 // pred_check_branch
          %469 = sbr.rel (%p467) target = $region48
        $region47: #{tpu_custom_call.1} parent=43 // pred_region
          %s470 = sand.u32 %s76, 1
          %s471 = scalar_lea.sflag [#allocation4], %s470
          %s472 = sand.u32 %s76, 1
          %s473 = smul.addr %s472, 8
          %s474 = scalar_lea.vmem [#allocation7], %s473
          %476 = dma.done %s471, 128
        $region48: #{tpu_custom_call.1} parent=43 // pred_fallthru
          _
      $region44: #{tpu_custom_call.1} parent=5 // pred_fallthru
        _
    $region6: #{tpu_custom_call.1} parent=1 // loop_footer
      %s19 = sadd.s32 1, %s15
    $region7: #{tpu_custom_call.1} parent=1 // loop_footer_branch
      %14 = sbr.rel target = $region3
    $region8: #{tpu_custom_call.1} parent=1 // loop_exit
      _
    %477 = vsyncpa [#allocation3], 1
    %s478 = scalar_lea.sflag [#allocation3], 1
    %479 = vsyncpa %s478, 1
    %480 = vsyncpa [#allocation6], 1
    %481 = vsyncpa [#allocation4], 1
    %s482 = scalar_lea.sflag [#allocation4], 1
    %483 = vsyncpa %s482, 1

</llo_original>
